<compile_context>
chip_gen: v6e
topology: v6e:2x2x1
jax: 0.10.0
libtpu: 0.0.40
codegen_flags: <defaults>
</compile_context>

<pallas_src>
import functools
import sys

import jax
import jax.numpy as jnp
from jax.experimental import pallas as pl
from jax.experimental.pallas import tpu as pltpu


_LANE = 512                                   # lane-dense width of the flattened logits slab
_TILE_BYTES = 4 * 1024 * 1024                 # per-tile input bytes (2048 f32 / 4096 bf16 rows)
_OBJ_LOGIT_THRESHOLD = -0.8472978603872036    # logit(0.3) = ln(0.3 / 0.7)


# ----------------------------------------------------------------------------
# Pallas kernels
# ----------------------------------------------------------------------------
def _bg_focal_kernel(x_ref, out_ref, *, alpha, gamma, n_valid, tile_elems):
    """Per-tile partial sum of the background-only (t == 0) focal loss.

    x_ref  : (tile_rows, _LANE) lane-dense block of the flattened logits.
    out_ref: (1, 1, 128) lane-dense per-tile partial sums (final reduce in JAX).

    For t == 0:  BCE(x, 0) = softplus(x),  p_t = 1 - sigmoid(x), so
        loss0(x) = (1 - alpha) * sigmoid(x)^gamma * softplus(x).
    """
    pid = pl.program_id(0)

    def compute_and_write(apply_mask):
        # Cast in-kernel: bf16 stays bf16 over HBM/DMA; compute is f32
        # (required on v5e where VPU/EUP have no bf16 path).
        x = x_ref[...].astype(jnp.float32)
        e = jnp.exp(-jnp.abs(x))                       # shared transcendental
        inv = pl.reciprocal(1.0 + e, approx=True)      # EUP vrcp, near-free
        prob = jnp.where(x >= 0.0, inv, e * inv)       # == sigmoid(x)
        ce0 = jnp.maximum(x, 0.0) + jnp.log(1.0 + e)   # == softplus(x) == BCE(x, 0)
        mod = prob * prob if gamma == 2.0 else jnp.power(prob, gamma)
        loss = ce0 * mod
        if alpha >= 0:
            loss = (1.0 - alpha) * loss

        if apply_mask:
            # Only traced into the branch taken by the tile that contains
            # padding / edge-block garbage.  SELECT (not multiply): the
            # out-of-bounds region of an edge block is unspecified.
            tr, lanes = loss.shape
            base = pid * tile_elems                    # int32; wrapper asserts no overflow
            row_i = jax.lax.broadcasted_iota(jnp.int32, (tr, lanes), 0)
            col_i = jax.lax.broadcasted_iota(jnp.int32, (tr, lanes), 1)
            flat_idx = base + row_i * lanes + col_i
            loss = jnp.where(flat_idx < n_valid, loss, 0.0)

        # Lane fold: vreg-aligned 128-wide slices added on the VPU, then a
        # single sublane reduce per tile -> (1, 128) lane-dense partial.
        folded = loss[:, 0:128]
        for k in range(1, _LANE // 128):
            folded = folded + loss[:, k * 128:(k + 1) * 128]
        out_ref[...] = jnp.sum(folded, axis=0, keepdims=True)[None]

    # Invalid (padded / out-of-range) elements can only exist in the last tile.
    has_invalid = (pid + 1) * tile_elems > n_valid

    @pl.when(has_invalid)
    def _():
        compute_and_write(True)

    @pl.when(jnp.logical_not(has_invalid))
    def _():
        compute_and_write(False)


def _cardinality_kernel(x_ref, tl_ref, out_ref):
    """mean_b | #{q : logit[b, q] > logit(0.3)} - tgt_len[b] |  (vectorized)."""
    x = x_ref[...].astype(jnp.float32)                         # [B, Q]
    hits = (x > _OBJ_LOGIT_THRESHOLD).astype(jnp.float32)      # no sigmoid needed
    card = jnp.sum(hits, axis=-1, keepdims=True)               # [B, 1]
    out_ref[0, 0] = jnp.mean(jnp.abs(card - tl_ref[...]))


# ----------------------------------------------------------------------------
# Wrappers around pallas_call
# ----------------------------------------------------------------------------
def background_focal_loss_sum(logits, alpha=0.25, gamma=2.0):
    """sum over ALL elements of focal_loss(logits, target=0) via one Pallas pass."""
    n = int(logits.size)
    if n == 0:
        return jnp.float32(0.0)
    flat = logits.reshape(-1)                       # native dtype; reshape is free

    rows = -(-n // _LANE)
    n_pad = rows * _LANE
    if n_pad != n:
        # Tail-only pad (< _LANE elements); skipped entirely when n % _LANE == 0.
        flat = jnp.pad(flat, (0, n_pad - n))
    x2 = flat.reshape(rows, _LANE)

    itemsize = jnp.dtype(logits.dtype).itemsize
    max_rows = max(_TILE_BYTES // (_LANE * itemsize), 8)   # 2048 f32 / 4096 bf16 / 8192 i8
    if rows <= max_rows:
        tile_rows = rows            # full second-minor dim: always a legal block
        num_tiles = 1
    else:
        tile_rows = max_rows        # multiple of the dtype sublane packing by construction
        num_tiles = -(-rows // tile_rows)   # ragged last block masked in-kernel

    tile_elems = tile_rows * _LANE
    assert num_tiles * tile_elems < 2 ** 31, "int32 flat-index math in kernel would overflow"

    kernel = functools.partial(
        _bg_focal_kernel, alpha=float(alpha), gamma=float(gamma),
        n_valid=n, tile_elems=tile_elems)

    partials = pl.pallas_call(
        kernel,
        out_shape=jax.ShapeDtypeStruct((num_tiles, 1, 128), jnp.float32),
        grid=(num_tiles,),
        in_specs=[pl.BlockSpec((tile_rows, _LANE), lambda i: (i, 0))],
        out_specs=pl.BlockSpec((1, 1, 128), lambda i: (i, 0, 0)),
        compiler_params=pltpu.CompilerParams(
            dimension_semantics=("parallel",),        # independent per-tile partials
            vmem_limit_bytes=32 * 1024 * 1024,
        ),
    )(x2)
    return jnp.sum(partials)


def cardinality_error(pred_logits, tgt_lengths):
    B, Q = int(pred_logits.shape[0]), int(pred_logits.shape[1])
    x = pred_logits.reshape(B, Q)                              # squeeze(-1), native dtype
    tl = jnp.asarray(tgt_lengths, jnp.float32).reshape(B, 1)
    out = pl.pallas_call(
        _cardinality_kernel,
        out_shape=jax.ShapeDtypeStruct((1, 1), jnp.float32),
        in_specs=[
            pl.BlockSpec(memory_space=pltpu.MemorySpace.VMEM),  # logits [B, Q]
            pl.BlockSpec(memory_space=pltpu.MemorySpace.VMEM),  # tgt lengths [B, 1]
        ],
        out_specs=pl.BlockSpec(memory_space=pltpu.MemorySpace.SMEM),
    )(x, tl)
    return out[0, 0]


# ----------------------------------------------------------------------------
# Plain-JAX helpers (tiny matched-row correction, reference, glue)
# ----------------------------------------------------------------------------
def _focal_loss_elementwise(x, t, alpha, gamma):
    x = x.astype(jnp.float32)
    t = t.astype(jnp.float32)
    prob = jax.nn.sigmoid(x)
    ce = jnp.maximum(x, 0.0) - x * t + jnp.log1p(jnp.exp(-jnp.abs(x)))
    p_t = prob * t + (1.0 - prob) * (1.0 - t)
    loss = ce * jnp.power(1.0 - p_t, gamma)
    if alpha >= 0:
        loss = (alpha * t + (1.0 - alpha) * (1.0 - t)) * loss
    return loss


def _matched_focal_correction(matched_logits, matched_targets, alpha, gamma):
    """sum over the M matched rows of [focal(x, t) - focal(x, 0)]  (tiny, plain JAX)."""
    if matched_logits.shape[0] == 0:
        return jnp.float32(0.0)
    full = _focal_loss_elementwise(matched_logits, matched_targets, alpha, gamma)
    bg = _focal_loss_elementwise(matched_logits, jnp.zeros_like(matched_targets), alpha, gamma)
    return jnp.sum(full - bg)


def sigmoid_focal_loss_reference(inputs, targets, num_boxes, alpha=0.25, gamma=2.0):
    """Pure-JAX dense reference (used only for the self-check in __main__)."""
    loss = _focal_loss_elementwise(inputs, targets, alpha, gamma)
    return loss.mean(1).sum() / num_boxes


def trivial_matcher(outputs, targets):
    # TODO(synk): Hungarian matching (scipy.optimize.linear_sum_assignment) has no
    # clean Pallas equivalent; using a deterministic identity matching instead.
    indices = []
    for t in targets:
        n = int(t["boxes"].shape[0])
        indices.append((jnp.arange(n, dtype=jnp.int32), jnp.arange(n, dtype=jnp.int32)))
    return indices


def _accuracy_top1(probs, target_onehot):
    # TODO(synk): reference `accuracy` util was not provided; using top-1 accuracy
    # of argmax(prob) vs argmax(multi-hot label).
    if probs.shape[0] == 0:
        return jnp.float32(100.0)
    pred = jnp.argmax(probs, axis=-1)
    tgt = jnp.argmax(target_onehot, axis=-1)
    return 100.0 * jnp.mean((pred == tgt).astype(jnp.float32))


# ----------------------------------------------------------------------------
# SetCriterion
# ----------------------------------------------------------------------------
class SetCriterion:
    """JAX/Pallas port of the DETR SetCriterion forward pass."""

    def __init__(self, matcher, losses, focal_alpha=0.25):
        self.matcher = matcher
        self.losses = losses
        self.focal_alpha = focal_alpha

    # ---- index helpers -----------------------------------------------------
    def _get_src_permutation_idx(self, indices):
        batch_idx = jnp.concatenate(
            [jnp.full_like(src, i) for i, (src, _) in enumerate(indices)]
        )
        src_idx = jnp.concatenate([src for src, _ in indices])
        return batch_idx, src_idx

    def _get_tgt_permutation_idx(self, indices):
        batch_idx = jnp.concatenate(
            [jnp.full_like(tgt, i) for i, (_, tgt) in enumerate(indices)]
        )
        tgt_idx = jnp.concatenate([tgt for _, tgt in indices])
        return batch_idx, tgt_idx

    # ---- losses --------------------------------------------------------------
    def loss_labels(self, outputs, targets, indices, num_boxes, log=True):
        assert "action_pred_logits" in outputs
        src_logits = outputs["action_pred_logits"]                       # [B, Q, C]

        if outputs.get("pred_boxes_mask") is not None:
            # TODO(synk): per-image boolean-mask path needs dynamic shapes; only the
            # dense (pred_boxes_mask is None) path is implemented.
            raise NotImplementedError("pred_boxes_mask path not implemented")

        batch_idx, src_idx = self._get_src_permutation_idx(indices)
        target_classes_o = jnp.concatenate(
            [t["labels"][J] for t, (_, J) in zip(targets, indices)], axis=0
        )                                                                # [M, C]

        q = src_logits.shape[1]
        # Exact decomposition:  sum_all focal(x, onehot)
        #   = sum_all focal(x, 0) + sum_{matched rows} [focal(x, t) - focal(x, 0)]
        # so the dense [B,Q,C] one-hot tensor (zeros + scatter + a full HBM read
        # stream in the kernel) is never materialized.
        bg_sum = background_focal_loss_sum(src_logits, alpha=self.focal_alpha, gamma=2.0)
        matched_logits = src_logits[batch_idx, src_idx]                  # [M, C] tiny gather
        corr = _matched_focal_correction(matched_logits, target_classes_o,
                                         alpha=self.focal_alpha, gamma=2.0)
        loss_ce = (bg_sum + corr) / (q * num_boxes)   # == focal.mean(1).sum() / num_boxes
        losses = {"loss": loss_ce * q}

        if log:
            matched_probs = jax.nn.sigmoid(matched_logits)
            losses["class_error"] = 100.0 - _accuracy_top1(matched_probs, target_classes_o)
        return losses

    def loss_cardinality(self, outputs, targets, indices, num_boxes):
        pred_logits = outputs["pred_logits"]                              # [B, Q, 1]
        tgt_lengths = jnp.asarray(
            [t["boxes"].shape[0] for t in targets], dtype=jnp.float32
        )
        return {"cardinality_error": cardinality_error(pred_logits, tgt_lengths)}

    def get_loss(self, loss, outputs, targets, indices, num_boxes, **kwargs):
        loss_map = {"labels": self.loss_labels, "cardinality": self.loss_cardinality}
        assert loss in loss_map, f"do you really want to compute {loss} loss?"
        return loss_map[loss](outputs, targets, indices, num_boxes, **kwargs)

    # ---- forward -------------------------------------------------------------
    def __call__(self, outputs, targets):
        indices = self.matcher(outputs, targets)
        num_boxes = sum(int(t["boxes"].shape[0]) for t in targets)
        # single-device: no all_reduce, world_size = 1
        num_boxes = max(float(num_boxes), 1.0)
        losses = {}
        for loss in self.losses:
            losses.update(self.get_loss(loss, outputs, targets, indices, num_boxes))
        return losses


# ----------------------------------------------------------------------------
# Example run
# ----------------------------------------------------------------------------
if __name__ == "__main__":
    B, Q, C = 2, 8, 4            # batch, queries, action classes
    key = jax.random.PRNGKey(0)
    k1, k2, k3 = jax.random.split(key, 3)

    outputs = {
        "action_pred_logits": jax.random.normal(k1, (B, Q, C), jnp.float32),
        "pred_logits": jax.random.normal(k2, (B, Q, 1), jnp.float32),
        "pred_boxes_mask": None,
    }

    n_boxes = [3, 2]
    targets = []
    for i, nb in enumerate(n_boxes):
        kb, kl = jax.random.split(jax.random.fold_in(k3, i))
        cls = jax.random.randint(kl, (nb,), 0, C)
        targets.append(
            {
                "labels": jax.nn.one_hot(cls, C, dtype=jnp.float32),   # multi-hot labels
                "boxes": jax.random.uniform(kb, (nb, 4), jnp.float32),
            }
        )

    criterion = SetCriterion(trivial_matcher, losses=["labels", "cardinality"],
                             focal_alpha=0.25)
    loss_dict = criterion(outputs, targets)
    for v in loss_dict.values():
        jax.block_until_ready(v)

    # Quiet self-check of the decomposed kernel path vs a dense pure-JAX
    # reference (warns on stderr only; tolerance covers the approx reciprocal).
    indices = trivial_matcher(outputs, targets)
    b_idx = jnp.concatenate([jnp.full_like(s, i) for i, (s, _) in enumerate(indices)])
    s_idx = jnp.concatenate([s for s, _ in indices])
    tco = jnp.concatenate([t["labels"][J] for t, (_, J) in zip(targets, indices)], axis=0)
    onehot = jnp.zeros((B, Q, C), jnp.float32).at[b_idx, s_idx].set(tco)
    num_boxes = max(float(sum(n_boxes)), 1.0)
    ref_loss = sigmoid_focal_loss_reference(
        outputs["action_pred_logits"], onehot, num_boxes, alpha=0.25, gamma=2.0) * Q
    rel = abs(float(loss_dict["loss"]) - float(ref_loss)) / max(abs(float(ref_loss)), 1e-6)
    if rel > 1e-2:
        print(f"WARNING: focal loss mismatch vs reference (rel={rel:.3e})", file=sys.stderr)

    print("KERNEL_OK")
</pallas_src>

<mosaic_0001>
module attributes {stable_mosaic.version = 11 : i64} {
  func.func @_bg_focal_kernel(%arg0: i32, %arg1: memref<1x512xf32, #tpu.memory_space<vmem>>, %arg2: memref<1x1x128xf32, #tpu.memory_space<vmem>>) attributes {dimension_semantics = [#tpu.dimension_semantics<parallel>], iteration_bounds = array<i64: 1>, scalar_prefetch = 0 : i64, scratch_operands = 0 : i64, tpu.core_type = #tpu.core_type<tc>, window_params = [{transform_indices = @transform_0, window_bounds = array<i64: 1, 512>}, {transform_indices = @transform_1, window_bounds = array<i64: 1, 1, 128>}]} {
    %c1_i32 = arith.constant 1 : i32
    %0 = arith.addi %arg0, %c1_i32 : i32
    %c512_i32 = arith.constant 512 : i32
    %1 = arith.muli %0, %c512_i32 : i32
    %c64_i32 = arith.constant 64 : i32
    %2 = arith.cmpi sgt, %1, %c64_i32 : i32
    %3 = arith.extui %2 : i1 to i32
    %c0_i32 = arith.constant 0 : i32
    %4 = arith.cmpi ne, %3, %c0_i32 : i32
    scf.if %4 {
      %c0 = arith.constant 0 : index
      %c0_1 = arith.constant 0 : index
      %8 = vector.load %arg1[%c0, %c0_1] : memref<1x512xf32, #tpu.memory_space<vmem>>, vector<1x512xf32>
      %9 = math.absf %8 : vector<1x512xf32>
      %cst = arith.constant 0.000000e+00 : f32
      %10 = vector.broadcast %cst : f32 to vector<1x512xf32>
      %11 = arith.subf %10, %9 : vector<1x512xf32>
      %12 = math.exp %11 : vector<1x512xf32>
      %cst_2 = arith.constant 1.000000e+00 : f32
      %13 = vector.broadcast %cst_2 : f32 to vector<1x512xf32>
      %14 = arith.addf %13, %12 : vector<1x512xf32>
      %15 = tpu.reciprocal %14 {approx = true} : vector<1x512xf32> -> vector<1x512xf32>
      %cst_3 = arith.constant 0.000000e+00 : f32
      %16 = vector.broadcast %cst_3 : f32 to vector<1x512xf32>
      %17 = arith.cmpf oge, %8, %16 : vector<1x512xf32>
      %18 = arith.mulf %12, %15 : vector<1x512xf32>
      %19 = arith.select %17, %15, %18 : vector<1x512xi1>, vector<1x512xf32>
      %cst_4 = arith.constant 0.000000e+00 : f32
      %20 = vector.broadcast %cst_4 : f32 to vector<1x512xf32>
      %21 = arith.maximumf %8, %20 : vector<1x512xf32>
      %cst_5 = arith.constant 1.000000e+00 : f32
      %22 = vector.broadcast %cst_5 : f32 to vector<1x512xf32>
      %23 = arith.addf %22, %12 : vector<1x512xf32>
      %24 = math.log %23 : vector<1x512xf32>
      %25 = arith.addf %21, %24 : vector<1x512xf32>
      %26 = arith.mulf %19, %19 : vector<1x512xf32>
      %27 = arith.mulf %25, %26 : vector<1x512xf32>
      %cst_6 = arith.constant 7.500000e-01 : f32
      %28 = vector.broadcast %cst_6 : f32 to vector<1x512xf32>
      %29 = arith.mulf %28, %27 : vector<1x512xf32>
      %c512_i32_7 = arith.constant 512 : i32
      %30 = arith.muli %arg0, %c512_i32_7 : i32
      %31 = tpu.iota {dimensions = array<i32: 0>} : vector<1x512xi32>
      %32 = tpu.iota {dimensions = array<i32: 1>} : vector<1x512xi32>
      %c512_i32_8 = arith.constant 512 : i32
      %33 = vector.broadcast %c512_i32_8 : i32 to vector<1x512xi32>
      %34 = arith.muli %31, %33 : vector<1x512xi32>
      %35 = vector.broadcast %30 : i32 to vector<1x512xi32>
      %36 = arith.addi %35, %34 : vector<1x512xi32>
      %37 = arith.addi %36, %32 : vector<1x512xi32>
      %c64_i32_9 = arith.constant 64 : i32
      %38 = vector.broadcast %c64_i32_9 : i32 to vector<1x512xi32>
      %39 = arith.cmpi slt, %37, %38 : vector<1x512xi32>
      %cst_10 = arith.constant 0.000000e+00 : f32
      %40 = vector.broadcast %cst_10 : f32 to vector<1x512xf32>
      %41 = arith.select %39, %29, %40 : vector<1x512xi1>, vector<1x512xf32>
      %42 = vector.extract_strided_slice %41 {offsets = [0, 0], sizes = [1, 128], strides = [1, 1]} : vector<1x512xf32> to vector<1x128xf32>
      %43 = vector.extract_strided_slice %41 {offsets = [0, 128], sizes = [1, 128], strides = [1, 1]} : vector<1x512xf32> to vector<1x128xf32>
      %44 = arith.addf %42, %43 : vector<1x128xf32>
      %45 = vector.extract_strided_slice %41 {offsets = [0, 256], sizes = [1, 128], strides = [1, 1]} : vector<1x512xf32> to vector<1x128xf32>
      %46 = arith.addf %44, %45 : vector<1x128xf32>
      %47 = vector.extract_strided_slice %41 {offsets = [0, 384], sizes = [1, 128], strides = [1, 1]} : vector<1x512xf32> to vector<1x128xf32>
      %48 = arith.addf %46, %47 : vector<1x128xf32>
      %cst_11 = arith.constant dense<0.000000e+00> : vector<128xf32>
      %49 = vector.multi_reduction <add>, %48, %cst_11 [0] : vector<1x128xf32> to vector<128xf32>
      %50 = vector.shape_cast %49 : vector<128xf32> to vector<1x128xf32>
      %51 = vector.shape_cast %50 : vector<1x128xf32> to vector<1x1x128xf32>
      %c0_12 = arith.constant 0 : index
      %c0_13 = arith.constant 0 : index
      %c0_14 = arith.constant 0 : index
      %52 = vector.load %arg2[%c0_12, %c0_13, %c0_14] : memref<1x1x128xf32, #tpu.memory_space<vmem>>, vector<1x1x128xf32>
      tpu.vector_store %arg2[%c0_12, %c0_13, %c0_14], %51 {strides = array<i32>} : memref<1x1x128xf32, #tpu.memory_space<vmem>>, vector<1x1x128xf32>,
    } else {
    }
    %true = arith.constant true
    %5 = arith.xori %2, %true : i1
    %6 = arith.extui %5 : i1 to i32
    %c0_i32_0 = arith.constant 0 : i32
    %7 = arith.cmpi ne, %6, %c0_i32_0 : i32
    scf.if %7 {
      %c0 = arith.constant 0 : index
      %c0_1 = arith.constant 0 : index
      %8 = vector.load %arg1[%c0, %c0_1] : memref<1x512xf32, #tpu.memory_space<vmem>>, vector<1x512xf32>
      %9 = math.absf %8 : vector<1x512xf32>
      %cst = arith.constant 0.000000e+00 : f32
      %10 = vector.broadcast %cst : f32 to vector<1x512xf32>
      %11 = arith.subf %10, %9 : vector<1x512xf32>
      %12 = math.exp %11 : vector<1x512xf32>
      %cst_2 = arith.constant 1.000000e+00 : f32
      %13 = vector.broadcast %cst_2 : f32 to vector<1x512xf32>
      %14 = arith.addf %13, %12 : vector<1x512xf32>
      %15 = tpu.reciprocal %14 {approx = true} : vector<1x512xf32> -> vector<1x512xf32>
      %cst_3 = arith.constant 0.000000e+00 : f32
      %16 = vector.broadcast %cst_3 : f32 to vector<1x512xf32>
      %17 = arith.cmpf oge, %8, %16 : vector<1x512xf32>
      %18 = arith.mulf %12, %15 : vector<1x512xf32>
      %19 = arith.select %17, %15, %18 : vector<1x512xi1>, vector<1x512xf32>
      %cst_4 = arith.constant 0.000000e+00 : f32
      %20 = vector.broadcast %cst_4 : f32 to vector<1x512xf32>
      %21 = arith.maximumf %8, %20 : vector<1x512xf32>
      %cst_5 = arith.constant 1.000000e+00 : f32
      %22 = vector.broadcast %cst_5 : f32 to vector<1x512xf32>
      %23 = arith.addf %22, %12 : vector<1x512xf32>
      %24 = math.log %23 : vector<1x512xf32>
      %25 = arith.addf %21, %24 : vector<1x512xf32>
      %26 = arith.mulf %19, %19 : vector<1x512xf32>
      %27 = arith.mulf %25, %26 : vector<1x512xf32>
      %cst_6 = arith.constant 7.500000e-01 : f32
      %28 = vector.broadcast %cst_6 : f32 to vector<1x512xf32>
      %29 = arith.mulf %28, %27 : vector<1x512xf32>
      %30 = vector.extract_strided_slice %29 {offsets = [0, 0], sizes = [1, 128], strides = [1, 1]} : vector<1x512xf32> to vector<1x128xf32>
      %31 = vector.extract_strided_slice %29 {offsets = [0, 128], sizes = [1, 128], strides = [1, 1]} : vector<1x512xf32> to vector<1x128xf32>
      %32 = arith.addf %30, %31 : vector<1x128xf32>
      %33 = vector.extract_strided_slice %29 {offsets = [0, 256], sizes = [1, 128], strides = [1, 1]} : vector<1x512xf32> to vector<1x128xf32>
      %34 = arith.addf %32, %33 : vector<1x128xf32>
      %35 = vector.extract_strided_slice %29 {offsets = [0, 384], sizes = [1, 128], strides = [1, 1]} : vector<1x512xf32> to vector<1x128xf32>
      %36 = arith.addf %34, %35 : vector<1x128xf32>
      %cst_7 = arith.constant dense<0.000000e+00> : vector<128xf32>
      %37 = vector.multi_reduction <add>, %36, %cst_7 [0] : vector<1x128xf32> to vector<128xf32>
      %38 = vector.shape_cast %37 : vector<128xf32> to vector<1x128xf32>
      %39 = vector.shape_cast %38 : vector<1x128xf32> to vector<1x1x128xf32>
      %c0_8 = arith.constant 0 : index
      %c0_9 = arith.constant 0 : index
      %c0_10 = arith.constant 0 : index
      %40 = vector.load %arg2[%c0_8, %c0_9, %c0_10] : memref<1x1x128xf32, #tpu.memory_space<vmem>>, vector<1x1x128xf32>
      tpu.vector_store %arg2[%c0_8, %c0_9, %c0_10], %39 {strides = array<i32>} : memref<1x1x128xf32, #tpu.memory_space<vmem>>, vector<1x1x128xf32>,
    } else {
    }
    return
  }
  func.func @transform_0(%arg0: i32) -> (i32, i32) {
    %c0_i32 = arith.constant 0 : i32
    %c0_i32_0 = arith.constant 0 : i32
    return %arg0, %c0_i32 : i32, i32
  }
  func.func @transform_1(%arg0: i32) -> (i32, i32, i32) {
    %c0_i32 = arith.constant 0 : i32
    %c0_i32_0 = arith.constant 0 : i32
    %c0_i32_1 = arith.constant 0 : i32
    return %arg0, %c0_i32, %c0_i32_0 : i32, i32, i32
  }
}

</mosaic_0001>

<llo_original>
// kernel: tpu_custom_call.1
$region0: #{tpu_custom_call.1}
  #allocation0 [shape = 'u32[]', space=smem, size = 0x4, offset = 0x4, fixed_abs, tag = 'smem constant byte address 0x4 - core index']
  #allocation1 [shape = 'u32[144,128]{1,0:T(1,128)}', space=vmem, size = 0x12000, scoped, tag = 'internal scratch']
  %s0 = inlined_call_operand.hbm [shape: f32[1,512], index: 0, kind: input, shape index: {}]
  %s1 = inlined_call_operand.hbm [shape: f32[1,1,128], index: 1, kind: output, shape index: {}]
  %s2 = sld [smem:[#allocation0]]
  $region26: #{tpu_custom_call.1} parent=0
    _
  %s4 = ssub.s32 1, %s2
  %s5 = scalar_select 0, %s4, %s2
  $region1: #{tpu_custom_call.1} parent=0
    #allocation2 [shape = 'u8[2048]{0}', space=vmem, size = 0x800, scoped, tag = 'input window, operand 0, single buffered']
    #allocation3 [shape = 's32[1]{0}', space=sflag, size = 0x4, scoped, tag = 'scoped memory for tpu_custom_call.1']
    #allocation4 [shape = 's32[1]{0}', space=sflag, size = 0x4, scoped, tag = 'scoped memory for tpu_custom_call.1']
    #allocation5 [shape = 'u8[512]{0}', space=vmem, size = 0x400, scoped, tag = 'output window, operand 0, single buffered']
    %6 = vsyncpa [#allocation3], 0
    %7 = vsyncpa [#allocation4], 0
    // Predicated region
    $region2: #{tpu_custom_call.1} parent=1 // pred_check
      _
    $region3: #{tpu_custom_call.1} parent=1 // pred_check_branch
      %9 = sbr.rel (0) target = $region5
    $region4: #{tpu_custom_call.1} parent=1 // pred_region
      %s11 = ssub.s32 64, 64
      %12 = vsyncadd [#allocation3], %s11
      %s14 = sshll.u32 [#allocation2], 4
      %s15 = int_to_ptr.vmem [resolvable:$true] %s14
      %17 = dma.hbm_to_vmem [thread:$0]  %s0, 64, %s15, [#allocation3]
    $region5: #{tpu_custom_call.1} parent=1 // pred_fallthru
      _
    // Predicated region
    $region6: #{tpu_custom_call.1} parent=1 // pred_check
      _
    $region7: #{tpu_custom_call.1} parent=1 // pred_check_branch
      %19 = sbr.rel (0) target = $region9
    $region8: #{tpu_custom_call.1} parent=1 // pred_region
      %20 = dma.done [#allocation3], 64
    $region9: #{tpu_custom_call.1} parent=1 // pred_fallthru
      _
    %s21 = sadd.s32 0, 1
    %s22 = smul.u32 %s21, 512
    %p23 = scmp.gt.s32.totalorder %s22, 64
    // Predicated region
    $region10: #{tpu_custom_call.1} parent=1 // pred_check
      %p24 = pneg %p23
    $region11: #{tpu_custom_call.1} parent=1 // pred_check_branch
      %26 = sbr.rel (%p24) target = $region13
    $region12: #{tpu_custom_call.1} parent=1 // pred_region
      %v27 = vld [vmem:[#allocation2] sm:$0xf]
      %v28 = vand.u32 2147483647, %v27
      %v29 = vsub.f32 0.0, %v28
      %v30 = vmul.f32 %v29, 1.442695
      %v31 = vpow.pop %v30
      %v32 = vadd.f32 %v31, 1.0
      %v33 = vrcp.pop %v32
      %vm34 = vcmp.ge.f32.partialorder %v27, 0.0
      %v35 = vmul.f32 %v31, %v33
      %v36 = vsel %vm34, %v33, %v35
      %v37 = vmax.f32 %v27, 0.0
      %v38 = vlog2.pop %v32
      %v39 = vmul.f32 %v38, 0.6931472
      %v40 = vadd.f32 %v37, %v39
      %v41 = vmul.f32 %v36, %v36
      %v42 = vmul.f32 %v40, %v41
      %v43 = vmul.f32 %v42, 0.75
      %s44 = smul.u32 0, 512
      %v45 = vlaneseq
      %v46 = vshrl.u32 %v45, 7
      %v47 = vlaneseq
      %v48 = vand.u32 %v47, 127
      %v49 = vadd.s32 %v48, 128
      %v50 = vadd.s32 %v48, 256
      %v51 = vadd.s32 %v48, 384
      %v52 = vmul.u32 %v46, 512
      %v53 = vstv %s44
      %v54 = vadd.s32 %v53, %v52
      %v55 = vadd.s32 %v54, %v48
      %v56 = vadd.s32 %v54, %v49
      %v57 = vadd.s32 %v54, %v50
      %v58 = vadd.s32 %v54, %v51
      %vm59 = vcmp.lt.s32.totalorder %v55, 64
      %vm60 = vcmp.lt.s32.totalorder %v56, 64
      %vm61 = vcmp.lt.s32.totalorder %v57, 64
      %vm62 = vcmp.lt.s32.totalorder %v58, 64
      %v64 = vlaneseq
      %v65 = vshrl.u32 %v64, 7
      %v66 = vsub.s32 0, %v65
      %v67 = vrot.slane %v43, %v66
      %v68 = vlaneseq
      %v69 = vshrl.u32 %v68, 7
      %v70 = vsub.s32 1, %v69
      %v71 = vrot.slane %v43, %v70
      %v72 = vlaneseq
      %v73 = vshrl.u32 %v72, 7
      %v74 = vsub.s32 2, %v73
      %v75 = vrot.slane %v43, %v74
      %v76 = vlaneseq
      %v77 = vshrl.u32 %v76, 7
      %v78 = vsub.s32 3, %v77
      %v79 = vrot.slane %v43, %v78
      %v84 = vsel %vm59, %v67, 0.0
      %v85 = vsel %vm60, %v71, 0.0
      %v86 = vsel %vm61, %v75, 0.0
      %v87 = vsel %vm62, %v79, 0.0
      %v88 = vadd.f32 %v84, %v85
      %v89 = vadd.f32 %v88, %v86
      %v90 = vadd.f32 %v89, %v87
      %v91 = vadd.f32 %v90, 0.0
      %92 = vst [vmem:[#allocation5] sm:$0x1] %v91
    $region13: #{tpu_custom_call.1} parent=1 // pred_fallthru
      _
    %p93 = scmp.le.s32.totalorder %s22, 64
    // Predicated region
    $region14: #{tpu_custom_call.1} parent=1 // pred_check
      %p94 = pneg %p93
    $region15: #{tpu_custom_call.1} parent=1 // pred_check_branch
      %96 = sbr.rel (%p94) target = $region17
    $region16: #{tpu_custom_call.1} parent=1 // pred_region
      %v97 = vld [vmem:[#allocation2] sm:$0xf]
      %v98 = vand.u32 2147483647, %v97
      %v99 = vsub.f32 0.0, %v98
      %v100 = vmul.f32 %v99, 1.442695
      %v101 = vpow.pop %v100
      %v102 = vadd.f32 %v101, 1.0
      %v103 = vrcp.pop %v102
      %vm104 = vcmp.ge.f32.partialorder %v97, 0.0
      %v105 = vmul.f32 %v101, %v103
      %v106 = vsel %vm104, %v103, %v105
      %v107 = vmax.f32 %v97, 0.0
      %v108 = vlog2.pop %v102
      %v109 = vmul.f32 %v108, 0.6931472
      %v110 = vadd.f32 %v107, %v109
      %v111 = vmul.f32 %v106, %v106
      %v112 = vmul.f32 %v110, %v111
      %v113 = vmul.f32 %v112, 0.75
      %v115 = vrot.slane %v113, 1
      %v117 = vadd.f32 %v113, %v115
      %v118 = vrot.slane %v113, 2
      %v120 = vadd.f32 %v117, %v118
      %v121 = vrot.slane %v113, 3
      %v123 = vadd.f32 %v120, %v121
      %v124 = vadd.f32 %v123, 0.0
      %125 = vst [vmem:[#allocation5] sm:$0x1] %v124
    $region17: #{tpu_custom_call.1} parent=1 // pred_fallthru
      _
    // Predicated region
    $region18: #{tpu_custom_call.1} parent=1 // pred_check
      _
    $region19: #{tpu_custom_call.1} parent=1 // pred_check_branch
      %127 = sbr.rel (0) target = $region21
    $region20: #{tpu_custom_call.1} parent=1 // pred_region
      %s129 = ssub.s32 16, 16
      %130 = vsyncadd [#allocation4], %s129
      %s132 = sshll.u32 [#allocation5], 4
      %s133 = int_to_ptr.vmem [resolvable:$true] %s132
      %135 = dma.vmem_to_hbm [thread:$0]  %s133, 16, %s1, [#allocation4]
    $region21: #{tpu_custom_call.1} parent=1 // pred_fallthru
      _
    // Predicated region
    $region22: #{tpu_custom_call.1} parent=1 // pred_check
      _
    $region23: #{tpu_custom_call.1} parent=1 // pred_check_branch
      %137 = sbr.rel (0) target = $region25
    $region24: #{tpu_custom_call.1} parent=1 // pred_region
      %138 = dma.done [#allocation4], 16
    $region25: #{tpu_custom_call.1} parent=1 // pred_fallthru
      _
    %139 = vsyncpa [#allocation3], 1
    %140 = vsyncpa [#allocation4], 1

</llo_original>
